<compile_context>
chip_gen: v7x
topology: tpu7x:2x2x1
jax: 0.10.0
libtpu: 0.0.40
codegen_flags: <defaults>
</compile_context>

<pallas_src>
import numpy as np
import jax
import jax.numpy as jnp
from jax.experimental import pallas as pl
from jax.experimental.pallas import tpu as pltpu

SCALES = (1, 2, 4, 8)


def _round_up(x, m):
    return (x + m - 1) // m * m


# ---------------------------------------------------------------------------
# Pallas kernel: out = relu(A @ W + B), f32 accumulation on the MXU.
# Grid = (M tiles, N tiles, K tiles), reduction axis (K) innermost.
# ---------------------------------------------------------------------------
def _mm_bias_relu_kernel(a_ref, w_ref, b_ref, o_ref, acc_ref):
    @pl.when(pl.program_id(2) == 0)
    def _():
        acc_ref[...] = jnp.zeros_like(acc_ref)

    acc_ref[...] += jnp.dot(a_ref[...], w_ref[...],
                            preferred_element_type=jnp.float32)

    @pl.when(pl.program_id(2) == pl.num_programs(2) - 1)
    def _():
        o_ref[...] = jnp.maximum(acc_ref[...] + b_ref[...], 0.0
                                 ).astype(o_ref.dtype)


def fused_matmul_bias_relu(a, w, bias, *, tm=256, tk=512, tn=256,
                           use_bf16=True):
    """relu(a @ w + bias) via Pallas.

    Pads M to the row tile, K to a sublane/K-tile multiple and cout to a
    lane-dense multiple of 128 (sliced off on return). Operands are cast to
    bf16 (f32 accumulation); bias stays f32.
    """
    M, K = a.shape
    K2, N = w.shape
    assert K == K2 and bias.shape == (M, N)

    # Row (M) tiling: pad up to the tile, never fall back to a whole-array block.
    if M >= tm:
        Mp, tm_e = _round_up(M, tm), tm
    else:
        Mp = _round_up(M, 8)
        tm_e = Mp
    # Reduction (K) tiling.
    if K > tk:
        Kp, tk_e = _round_up(K, tk), tk
    else:
        Kp = _round_up(K, 8)
        tk_e = Kp
    # Output-channel (N) tiling: lane-dense (multiple of 128).
    Np = _round_up(N, 128)
    tn_e = tn if Np % tn == 0 else 128

    op_dtype = jnp.bfloat16 if use_bf16 else jnp.float32
    ap = jnp.pad(a.astype(op_dtype), ((0, Mp - M), (0, Kp - K)))
    wp = jnp.pad(w.astype(op_dtype), ((0, Kp - K), (0, Np - N)))
    bp = jnp.pad(bias.astype(jnp.float32), ((0, Mp - M), (0, Np - N)))

    out = pl.pallas_call(
        _mm_bias_relu_kernel,
        out_shape=jax.ShapeDtypeStruct((Mp, Np), jnp.float32),
        grid=(Mp // tm_e, Np // tn_e, Kp // tk_e),
        in_specs=[
            pl.BlockSpec((tm_e, tk_e), lambda i, j, k: (i, k)),
            pl.BlockSpec((tk_e, tn_e), lambda i, j, k: (k, j)),
            pl.BlockSpec((tm_e, tn_e), lambda i, j, k: (i, j)),
        ],
        out_specs=pl.BlockSpec((tm_e, tn_e), lambda i, j, k: (i, j)),
        scratch_shapes=[pltpu.VMEM((tm_e, tn_e), jnp.float32)],
        compiler_params=pltpu.CompilerParams(
            dimension_semantics=("parallel", "parallel", "arbitrary"),
            vmem_limit_bytes=48 * 1024 * 1024,
        ),
    )(ap, wp, bp)
    return out[:M, :N]


# ---------------------------------------------------------------------------
# Small JAX glue (tiny s x s work): pooling, 3x3 conv, interpolation matrices.
# ---------------------------------------------------------------------------
def _block_mean(x_nhwc, s):
    n, h, w, c = x_nhwc.shape
    return x_nhwc.reshape(n, s, h // s, s, w // s, c).mean(axis=(2, 4))


def _adaptive_pool_matrix(out_size, in_size):
    """(out, in) averaging matrix matching nn.AdaptiveAvgPool2d (1-D factor)."""
    starts = (np.arange(out_size) * in_size) // out_size
    ends = np.ceil((np.arange(out_size) + 1) * in_size / out_size).astype(np.int64)
    P = np.zeros((out_size, in_size), np.float32)
    for i in range(out_size):
        P[i, starts[i]:ends[i]] = 1.0 / (ends[i] - starts[i])
    return jnp.asarray(P)


def _interp_matrix(out_size, in_size):
    """(out, in) bilinear (1-D) matrix, align_corners=False (F.interpolate)."""
    scale = in_size / out_size
    src = (np.arange(out_size, dtype=np.float64) + 0.5) * scale - 0.5
    src = np.maximum(src, 0.0)
    i0 = np.minimum(np.floor(src).astype(np.int64), in_size - 1)
    i1 = np.minimum(i0 + 1, in_size - 1)
    w1 = (src - i0).astype(np.float32)
    w0 = 1.0 - w1
    R = np.zeros((out_size, in_size), np.float32)
    R[np.arange(out_size), i0] += w0
    R[np.arange(out_size), i1] += w1
    return jnp.asarray(R)


def conv3x3_relu_nhwc(x_nhwc, w_oihw):
    # stride=1, pad=1, no bias (BasicConv2d with bn=False) on tiny s x s maps.
    w_hwio = jnp.transpose(w_oihw, (2, 3, 1, 0))
    y = jax.lax.conv_general_dilated(
        x_nhwc, w_hwio, window_strides=(1, 1), padding=((1, 1), (1, 1)),
        dimension_numbers=("NHWC", "HWIO", "NHWC"))
    return jnp.maximum(y, 0.0)


# ---------------------------------------------------------------------------
# PPM forward (public interface: NCHW, like the PyTorch module)
# ---------------------------------------------------------------------------
def ppm_forward(x_nchw, conv_ws, cat_w):
    n, c, h, w = x_nchw.shape
    cout = cat_w.shape[0]
    x = jnp.transpose(x_nchw, (0, 2, 3, 1))  # NHWC, single boundary transpose

    # Pooling pyramid: read x once, derive coarser levels hierarchically.
    if h % SCALES[-1] == 0 and w % SCALES[-1] == 0:
        pools = {}
        cur = _block_mean(x, SCALES[-1])
        pools[SCALES[-1]] = cur
        for s in reversed(SCALES[:-1]):
            cur = _block_mean(cur, s)
            pools[s] = cur
    else:
        # TODO(synk): general H,W path reads x once per scale; exact semantics.
        pools = {s: jnp.einsum("sh,nhwc,tw->nstc",
                               _adaptive_pool_matrix(s, h), x,
                               _adaptive_pool_matrix(s, w))
                 for s in SCALES}

    # Per branch: 3x3 conv + relu at s x s, apply its slice of the 1x1 cat
    # conv there (1x1 conv commutes with bilinear upsampling), then upsample
    # with dense interpolation matrices and accumulate the partial sums.
    w_cat = cat_w[:, :, 0, 0]                       # (Cout, 5C)
    bias = jnp.zeros((n, h, w, cout), jnp.float32)
    for b, (s, w3) in enumerate(zip(SCALES, conv_ws)):
        z = conv3x3_relu_nhwc(pools[s], w3)         # (N, s, s, C)
        wb = w_cat[:, b * c:(b + 1) * c]            # (Cout, C)
        p = jnp.einsum("nstc,oc->nsto", z, wb)      # tiny 1x1 conv at s x s
        rh = _interp_matrix(h, s)
        rw = _interp_matrix(w, s)
        bias = bias + jnp.einsum("hs,nsto,wt->nhwo", rh, p, rw)

    # Dominant path: relu(x_flat @ Wx + bias) as one Pallas matmul.
    wx = w_cat[:, len(SCALES) * c:].T               # (C, Cout)
    out = fused_matmul_bias_relu(x.reshape(n * h * w, c), wx,
                                 bias.reshape(n * h * w, cout))
    return jnp.transpose(out.reshape(n, h, w, cout), (0, 3, 1, 2))


# ---------------------------------------------------------------------------
# Straightforward (non-fused, f32) reference for validation.
# ---------------------------------------------------------------------------
def ppm_reference(x_nchw, conv_ws, cat_w):
    n, c, h, w = x_nchw.shape
    x = jnp.transpose(x_nchw, (0, 2, 3, 1))
    feats = []
    for s, w3 in zip(SCALES, conv_ws):
        pooled = jnp.einsum("sh,nhwc,tw->nstc",
                            _adaptive_pool_matrix(s, h), x,
                            _adaptive_pool_matrix(s, w))
        z = conv3x3_relu_nhwc(pooled, w3)
        feats.append(jnp.einsum("hs,nstc,wt->nhwc",
                                _interp_matrix(h, s), z, _interp_matrix(w, s)))
    feats.append(x)
    cat = jnp.concatenate(feats, axis=-1)           # (N, H, W, 5C)
    y = jnp.maximum(jnp.einsum("nhwc,oc->nhwo", cat, cat_w[:, :, 0, 0]), 0.0)
    return jnp.transpose(y, (0, 3, 1, 2))


if __name__ == "__main__":
    C = 4
    N, H, W = 2, 16, 16
    key = jax.random.PRNGKey(0)
    ks = jax.random.split(key, 6)
    # BasicConv2d init: conv weight ~ N(0, 0.01^2), no bias, no BN
    conv_ws = [0.01 * jax.random.normal(ks[i], (C, C, 3, 3), jnp.float32)
               for i in range(len(SCALES))]
    cat_w = 0.01 * jax.random.normal(ks[4], (C, (len(SCALES) + 1) * C, 1, 1),
                                     jnp.float32)
    x = jax.random.normal(ks[5], (N, C, H, W), jnp.float32)

    out = jax.jit(ppm_forward)(x, conv_ws, cat_w)
    jax.block_until_ready(out)
    ref = jax.jit(ppm_reference)(x, conv_ws, cat_w)
    jax.block_until_ready(ref)

    assert out.shape == (N, C, H, W)
    assert bool(jnp.all(jnp.isfinite(out)))
    # Generous tolerance: kernel runs bf16 operands with f32 accumulation.
    assert bool(jnp.allclose(out, ref, rtol=5e-2, atol=5e-3))
    print("KERNEL_OK")
</pallas_src>

<mosaic_0001>
module attributes {stable_mosaic.version = 11 : i64} {
  func.func @_mm_bias_relu_kernel(%arg0: i32, %arg1: i32, %arg2: i32, %arg3: memref<256x8xbf16, #tpu.memory_space<vmem>>, %arg4: memref<8x128xbf16, #tpu.memory_space<vmem>>, %arg5: memref<256x128xf32, #tpu.memory_space<vmem>>, %arg6: memref<256x128xf32, #tpu.memory_space<vmem>>, %arg7: memref<256x128xf32, #tpu.memory_space<vmem>>) attributes {dimension_semantics = [#tpu.dimension_semantics<parallel>, #tpu.dimension_semantics<parallel>, #tpu.dimension_semantics<arbitrary>], iteration_bounds = array<i64: 2, 1, 1>, scalar_prefetch = 0 : i64, scratch_operands = 1 : i64, tpu.core_type = #tpu.core_type<tc>, window_params = [{transform_indices = @transform_0, window_bounds = array<i64: 256, 8>}, {transform_indices = @transform_1, window_bounds = array<i64: 8, 128>}, {transform_indices = @transform_2, window_bounds = array<i64: 256, 128>}, {transform_indices = @transform_3, window_bounds = array<i64: 256, 128>}]} {
    %c0_i32 = arith.constant 0 : i32
    %0 = arith.cmpi eq, %arg2, %c0_i32 : i32
    %1 = arith.extui %0 : i1 to i32
    %c0_i32_0 = arith.constant 0 : i32
    %2 = arith.cmpi ne, %1, %c0_i32_0 : i32
    scf.if %2 {
      %cst_10 = arith.constant 0.000000e+00 : f32
      %12 = vector.broadcast %cst_10 : f32 to vector<256x128xf32>
      %c0_11 = arith.constant 0 : index
      %c0_12 = arith.constant 0 : index
      %13 = vector.load %arg7[%c0_11, %c0_12] : memref<256x128xf32, #tpu.memory_space<vmem>>, vector<256x128xf32>
      tpu.vector_store %arg7[%c0_11, %c0_12], %12 {strides = array<i32>} : memref<256x128xf32, #tpu.memory_space<vmem>>, vector<256x128xf32>,
    } else {
    }
    %c0 = arith.constant 0 : index
    %c0_1 = arith.constant 0 : index
    %3 = vector.load %arg7[%c0, %c0_1] : memref<256x128xf32, #tpu.memory_space<vmem>>, vector<256x128xf32>
    %c0_2 = arith.constant 0 : index
    %c0_3 = arith.constant 0 : index
    %4 = vector.load %arg3[%c0_2, %c0_3] : memref<256x8xbf16, #tpu.memory_space<vmem>>, vector<256x8xbf16>
    %c0_4 = arith.constant 0 : index
    %c0_5 = arith.constant 0 : index
    %5 = vector.load %arg4[%c0_4, %c0_5] : memref<8x128xbf16, #tpu.memory_space<vmem>>, vector<8x128xbf16>
    %cst = arith.constant dense<0.000000e+00> : vector<256x128xf32>
    %6 = tpu.matmul %4, %5, %cst {dimension_numbers = #tpu.dot_dimension_numbers<[1], [0], [0], [1], [0, 0, 1, 1], [], []>} : vector<256x8xbf16>, vector<8x128xbf16>, vector<256x128xf32> -> vector<256x128xf32>
    %7 = arith.addf %3, %6 : vector<256x128xf32>
    %c0_6 = arith.constant 0 : index
    %c0_7 = arith.constant 0 : index
    %8 = vector.load %arg7[%c0_6, %c0_7] : memref<256x128xf32, #tpu.memory_space<vmem>>, vector<256x128xf32>
    tpu.vector_store %arg7[%c0_6, %c0_7], %7 {strides = array<i32>} : memref<256x128xf32, #tpu.memory_space<vmem>>, vector<256x128xf32>,
    %c0_i32_8 = arith.constant 0 : i32
    %9 = arith.cmpi eq, %arg2, %c0_i32_8 : i32
    %10 = arith.extui %9 : i1 to i32
    %c0_i32_9 = arith.constant 0 : i32
    %11 = arith.cmpi ne, %10, %c0_i32_9 : i32
    scf.if %11 {
      %c0_10 = arith.constant 0 : index
      %c0_11 = arith.constant 0 : index
      %12 = vector.load %arg7[%c0_10, %c0_11] : memref<256x128xf32, #tpu.memory_space<vmem>>, vector<256x128xf32>
      %c0_12 = arith.constant 0 : index
      %c0_13 = arith.constant 0 : index
      %13 = vector.load %arg5[%c0_12, %c0_13] : memref<256x128xf32, #tpu.memory_space<vmem>>, vector<256x128xf32>
      %14 = arith.addf %12, %13 : vector<256x128xf32>
      %cst_14 = arith.constant 0.000000e+00 : f32
      %15 = vector.broadcast %cst_14 : f32 to vector<256x128xf32>
      %16 = arith.maximumf %14, %15 : vector<256x128xf32>
      %c0_15 = arith.constant 0 : index
      %c0_16 = arith.constant 0 : index
      %17 = vector.load %arg6[%c0_15, %c0_16] : memref<256x128xf32, #tpu.memory_space<vmem>>, vector<256x128xf32>
      tpu.vector_store %arg6[%c0_15, %c0_16], %16 {strides = array<i32>} : memref<256x128xf32, #tpu.memory_space<vmem>>, vector<256x128xf32>,
    } else {
    }
    return
  }
  func.func @transform_0(%arg0: i32, %arg1: i32, %arg2: i32) -> (i32, i32) {
    %c0_i32 = arith.constant 0 : i32
    return %arg0, %arg2 : i32, i32
  }
  func.func @transform_1(%arg0: i32, %arg1: i32, %arg2: i32) -> (i32, i32) {
    %c0_i32 = arith.constant 0 : i32
    return %arg2, %arg1 : i32, i32
  }
  func.func @transform_2(%arg0: i32, %arg1: i32, %arg2: i32) -> (i32, i32) {
    %c0_i32 = arith.constant 0 : i32
    return %arg0, %arg1 : i32, i32
  }
  func.func @transform_3(%arg0: i32, %arg1: i32, %arg2: i32) -> (i32, i32) {
    %c0_i32 = arith.constant 0 : i32
    return %arg0, %arg1 : i32, i32
  }
}

</mosaic_0001>

<llo_original>
// kernel: reverse
$region0: #{reverse}
  #allocation2 [shape = 's32[1]{0}', space=sflag, size = 0x4, scoped, tag = 'scoped memory for reverse']
  %s0 = inlined_call_operand.hbm [shape: f32[4,4,3,3], index: 0, kind: input, shape index: {}]
  %s1 = inlined_call_operand.vmem [shape: bf16[4,4,3,3], index: 1, kind: output, shape index: {}]
  $region1: #{reverse} parent=0
    #allocation0 [shape = 'u8[18432]{0}', space=vmem, size = 0x4800, scoped, tag = 'operand span for operand 0']
    #allocation1 [shape = 's32[1]{0}', space=sflag, size = 0x4, scoped, tag = 'scoped memory for reverse']
    %2 = vsyncpa [#allocation1], 0
    %s4 = ssub.s32 576, 576
    %5 = vsyncadd [#allocation1], %s4
    %s6 = sshll.u32 [#allocation0], 4
    %s7 = int_to_ptr.vmem [resolvable:$true] %s6
    %12 = dma.hbm_to_vmem [thread:$0]  %s0, 576, %s7, [#allocation1], 64, 64, 4
    %13 = dma.done [#allocation1], 576
    %s14 = scalar_lea.vmem [#allocation0], 32
    %v15 = vld [vmem:[%s14] sm:$0xf]
    %v16 = vpack.c.bf16 0.0, %v15
    %17 = vst [vmem:[%s1] sm:$0x3] %v16
    %s18 = scalar_lea.vmem [#allocation0], 20
    %v19 = vld [vmem:[%s18] sm:$0xf]
    %s20 = scalar_lea.vmem %s1, 6
    %v21 = vpack.c.bf16 0.0, %v19
    %22 = vst [vmem:[%s20] sm:$0x3] %v21
    %s23 = scalar_lea.vmem [#allocation0], 8
    %v24 = vld [vmem:[%s23] sm:$0xf]
    %s25 = scalar_lea.vmem %s1, 12
    %v26 = vpack.c.bf16 0.0, %v24
    %27 = vst [vmem:[%s25] sm:$0x3] %v26
    %s28 = scalar_lea.vmem [#allocation0], 28
    %v29 = vld [vmem:[%s28] sm:$0xf]
    %s30 = scalar_lea.vmem %s1, 2
    %v31 = vpack.c.bf16 0.0, %v29
    %32 = vst [vmem:[%s30] sm:$0x3] %v31
    %s33 = scalar_lea.vmem [#allocation0], 16
    %v34 = vld [vmem:[%s33] sm:$0xf]
    %s35 = scalar_lea.vmem %s1, 8
    %v36 = vpack.c.bf16 0.0, %v34
    %37 = vst [vmem:[%s35] sm:$0x3] %v36
    %s38 = scalar_lea.vmem [#allocation0], 4
    %v39 = vld [vmem:[%s38] sm:$0xf]
    %s40 = scalar_lea.vmem %s1, 14
    %v41 = vpack.c.bf16 0.0, %v39
    %42 = vst [vmem:[%s40] sm:$0x3] %v41
    %s43 = scalar_lea.vmem [#allocation0], 24
    %v44 = vld [vmem:[%s43] sm:$0xf]
    %s45 = scalar_lea.vmem %s1, 4
    %v46 = vpack.c.bf16 0.0, %v44
    %47 = vst [vmem:[%s45] sm:$0x3] %v46
    %s48 = scalar_lea.vmem [#allocation0], 12
    %v49 = vld [vmem:[%s48] sm:$0xf]
    %s50 = scalar_lea.vmem %s1, 10
    %v51 = vpack.c.bf16 0.0, %v49
    %52 = vst [vmem:[%s50] sm:$0x3] %v51
    %v53 = vld [vmem:[#allocation0] sm:$0xf]
    %s54 = scalar_lea.vmem %s1, 16
    %v55 = vpack.c.bf16 0.0, %v53
    %56 = vst [vmem:[%s54] sm:$0x3] %v55
    %57 = vsyncpa [#allocation1], 1

// kernel: ppm_forward.1
$region0: #{ppm_forward.1}
  #allocation0 [shape = 'u32[]', space=smem, size = 0x4, offset = 0x4, fixed_abs, tag = 'smem constant byte address 0x4 - core index']
  #allocation1 [shape = 'u32[144,128]{1,0:T(1,128)}', space=vmem, size = 0x12000, scoped, tag = 'internal scratch']
  #allocation2 [shape = 'f32[256,128]{1,0:T(8,128)}', space=vmem, size = 0x20000, scoped, tag = 'scratch operand']
  %s0 = inlined_call_operand.vmem [shape: bf16[512,8], index: 0, kind: input, shape index: {}]
  %s1 = inlined_call_operand.vmem [shape: bf16[8,128], index: 1, kind: input, shape index: {}]
  %s2 = inlined_call_operand.vmem [shape: f32[512,128], index: 2, kind: input, shape index: {}]
  %s3 = inlined_call_operand.vmem [shape: f32[512,128], index: 3, kind: output, shape index: {}]
  %s4 = sld [smem:[#allocation0]]
  $region53: #{ppm_forward.1} parent=0
    _
  %s6 = ssub.s32 1, %s4
  %s7 = scalar_select 0, %s6, %s4
  loop: start=0, step=1, limit=4
  $region2: #{ppm_forward.1} parent=0 // loop_pre_header
    _
  $region3: #{ppm_forward.1} parent=0 // loop_header
    %s9 = sphi 0, %s13
    %p10 = scmp.ge.s32.totalorder %s9, 4
    %s16 = sphi 0, %s35
    %s17 = sphi 0, %s31
    %s18 = sphi 0, %s27
    %s19 = sphi 0, %s16
    %s20 = sphi 0, %s17
    %s21 = sphi 0, %s18
    %s22 = sphi 0, %s19
    %s23 = sphi 0, %s20
    %s24 = sphi 0, %s21
    %s40 = sphi 0, %s42
    %s43 = sphi 0, %s40
    %s44 = sphi 0, %s43
    %s60 = sphi 0, %s44
    %s68 = sphi 0, %s70
    %s71 = sphi 0, %s68
    %s72 = sphi 0, %s71
    %s88 = sphi 0, %s72
    %s96 = sphi 0, %s98
    %s99 = sphi 0, %s96
    %s100 = sphi 0, %s99
    %s116 = sphi 0, %s100
    %s124 = sphi 0, %s126
    %s127 = sphi 0, %s124
    %s128 = sphi 0, %s127
    %s144 = sphi 0, %s128
  $region4: #{ppm_forward.1} parent=0 // loop_header_branch
    %12 = sbr.rel (%p10) target = $region8
  $region5: #{ppm_forward.1} parent=0 // loop_body
    %s14 = ssub.s32 %s9, 1
    %s15 = ssub.s32 %s9, 2
    %s25 = sadd.s32 1, %s18
    %p26 = scmp.ge.s32.totalorder %s25, 1
    %s27 = scalar_select %p26, 0, %s25
    %s28 = sadd.s32 1, %s17
    %s29 = scalar_select %p26, %s28, %s17
    %p30 = scmp.ge.s32.totalorder %s29, 1
    %s31 = scalar_select %p30, 0, %s29
    %s32 = sadd.s32 1, %s16
    %s33 = scalar_select %p30, %s32, %s16
    %p34 = scmp.ge.s32.totalorder %s33, 2
    %s35 = scalar_select %p34, 0, %s33
    %s36 = ssub.s32 %s16, %s35
    %s37 = ssub.s32 %s18, %s27
    %s38 = sor.u32 %s36, %s37
    %p39 = scmp.eq.s32.totalorder %s38, 0
    %s41 = sadd.s32 %s40, 1
    %s42 = scalar_select %p39, %s40, %s41
    %p45 = pneg %p39
    %p46 = scmp.eq.s32.totalorder %s9, 1
    %p47 = por %p45, %p46
    %p48 = scmp.ne.s32.totalorder %s40, %s43
    %p49 = scmp.eq.s32.totalorder %s9, 0
    %p50 = por %p48, %p49
    %p51 = scmp.ne.s32.totalorder %s40, %s43
    %p52 = scmp.eq.s32.totalorder %s14, 1
    %p53 = por %p51, %p52
    %p54 = scmp.ne.s32.totalorder %s43, %s44
    %p55 = scmp.eq.s32.totalorder %s14, 0
    %p56 = por %p54, %p55
    %p57 = scmp.ne.s32.totalorder %s43, %s44
    %p58 = scmp.eq.s32.totalorder %s15, 1
    %p59 = por %p57, %p58
    %p61 = scmp.ne.s32.totalorder %s44, %s60
    %p62 = scmp.eq.s32.totalorder %s15, 0
    %p63 = por %p61, %p62
    %s64 = ssub.s32 %s18, %s27
    %s65 = ssub.s32 %s17, %s31
    %s66 = sor.u32 %s64, %s65
    %p67 = scmp.eq.s32.totalorder %s66, 0
    %s69 = sadd.s32 %s68, 1
    %s70 = scalar_select %p67, %s68, %s69
    %p73 = pneg %p67
    %p74 = scmp.eq.s32.totalorder %s9, 1
    %p75 = por %p73, %p74
    %p76 = scmp.ne.s32.totalorder %s68, %s71
    %p77 = scmp.eq.s32.totalorder %s9, 0
    %p78 = por %p76, %p77
    %p79 = scmp.ne.s32.totalorder %s68, %s71
    %p80 = scmp.eq.s32.totalorder %s14, 1
    %p81 = por %p79, %p80
    %p82 = scmp.ne.s32.totalorder %s71, %s72
    %p83 = scmp.eq.s32.totalorder %s14, 0
    %p84 = por %p82, %p83
    %p85 = scmp.ne.s32.totalorder %s71, %s72
    %p86 = scmp.eq.s32.totalorder %s15, 1
    %p87 = por %p85, %p86
    %p89 = scmp.ne.s32.totalorder %s72, %s88
    %p90 = scmp.eq.s32.totalorder %s15, 0
    %p91 = por %p89, %p90
    %s92 = ssub.s32 %s16, %s35
    %s93 = ssub.s32 %s17, %s31
    %s94 = sor.u32 %s92, %s93
    %p95 = scmp.eq.s32.totalorder %s94, 0
    %s97 = sadd.s32 %s96, 1
    %s98 = scalar_select %p95, %s96, %s97
    %p101 = pneg %p95
    %p102 = scmp.eq.s32.totalorder %s9, 1
    %p103 = por %p101, %p102
    %p104 = scmp.ne.s32.totalorder %s96, %s99
    %p105 = scmp.eq.s32.totalorder %s9, 0
    %p106 = por %p104, %p105
    %p107 = scmp.ne.s32.totalorder %s96, %s99
    %p108 = scmp.eq.s32.totalorder %s14, 1
    %p109 = por %p107, %p108
    %p110 = scmp.ne.s32.totalorder %s99, %s100
    %p111 = scmp.eq.s32.totalorder %s14, 0
    %p112 = por %p110, %p111
    %p113 = scmp.ne.s32.totalorder %s99, %s100
    %p114 = scmp.eq.s32.totalorder %s15, 1
    %p115 = por %p113, %p114
    %p117 = scmp.ne.s32.totalorder %s100, %s116
    %p118 = scmp.eq.s32.totalorder %s15, 0
    %p119 = por %p117, %p118
    %s120 = ssub.s32 %s16, %s35
    %s121 = ssub.s32 %s17, %s31
    %s122 = sor.u32 %s120, %s121
    %p123 = scmp.eq.s32.totalorder %s122, 0
    %s125 = sadd.s32 %s124, 1
    %s126 = scalar_select %p123, %s124, %s125
    %p129 = pneg %p123
    %p130 = scmp.eq.s32.totalorder %s9, 1
    %p131 = por %p129, %p130
    %p132 = scmp.ne.s32.totalorder %s124, %s127
    %p133 = scmp.eq.s32.totalorder %s9, 0
    %p134 = por %p132, %p133
    %p135 = scmp.ne.s32.totalorder %s124, %s127
    %p136 = scmp.eq.s32.totalorder %s14, 1
    %p137 = por %p135, %p136
    %p138 = scmp.ne.s32.totalorder %s127, %s128
    %p139 = scmp.eq.s32.totalorder %s14, 0
    %p140 = por %p138, %p139
    %p141 = scmp.ne.s32.totalorder %s127, %s128
    %p142 = scmp.eq.s32.totalorder %s15, 1
    %p143 = por %p141, %p142
    %p145 = scmp.ne.s32.totalorder %s128, %s144
    %p146 = scmp.eq.s32.totalorder %s15, 0
    %p147 = por %p145, %p146
    %p148 = scmp.le.s32.totalorder 1, %s9
    %p149 = scmp.lt.s32.totalorder %s9, 3
    %p150 = pnand %p148, %p149
    %p151 = pneg %p150
    // Predicated region
    $region9: #{ppm_forward.1} parent=5 // pred_check
      _
    $region10: #{ppm_forward.1} parent=5 // pred_check_branch
      %153 = sbr.rel (%p150) target = $region12
    $region11: #{ppm_forward.1} parent=5 // pred_region
      %s154 = ssub.s32 %s9, 1
      // Predicated region
      $region13: #{ppm_forward.1} parent=11 // pred_check
        %p155 = pneg %p84
      $region14: #{ppm_forward.1} parent=11 // pred_check_branch
        %157 = sbr.rel (%p155) target = $region16
      $region15: #{ppm_forward.1} parent=11 // pred_region
        %p158 = scmp.lt.s32.totalorder %s21, 0
        %s159 = scalar_select %p158, %s21, 0
        %p160 = scmp.lt.s32.totalorder %s20, 0
        %s161 = scalar_select %p160, %s20, 0
        %s162 = sadd.s32 %s161, %s159
        %s163 = smul.addr %s162, 4
        %s164 = scalar_lea.vmem %s1, %s163
      $region16: #{ppm_forward.1} parent=11 // pred_fallthru
        _
    $region12: #{ppm_forward.1} parent=5 // pred_fallthru
      _
    %p165 = scmp.lt.s32.totalorder %s9, 2
    // Predicated region
    $region17: #{ppm_forward.1} parent=5 // pred_check
      %p166 = pneg %p165
    $region18: #{ppm_forward.1} parent=5 // pred_check_branch
      %168 = sbr.rel (%p166) target = $region20
    $region19: #{ppm_forward.1} parent=5 // pred_region
      // Predicated region
      $region21: #{ppm_forward.1} parent=19 // pred_check
        %p169 = pneg %p50
      $region22: #{ppm_forward.1} parent=19 // pred_check_branch
        %171 = sbr.rel (%p169) target = $region24
      $region23: #{ppm_forward.1} parent=19 // pred_region
        %s172 = smul.u32 32, %s16
        %p173 = scmp.lt.s32.totalorder %s172, 63
        %s174 = scalar_select %p173, %s172, 63
        %p175 = scmp.lt.s32.totalorder %s18, 0
        %s176 = scalar_select %p175, %s18, 0
        %s177 = sadd.s32 %s176, %s174
        %s178 = smul.addr %s177, 4
        %s179 = scalar_lea.vmem %s0, %s178
        %s180 = smul.u32 32, %s16
      $region24: #{ppm_forward.1} parent=19 // pred_fallthru
        _
      // Predicated region
      $region25: #{ppm_forward.1} parent=19 // pred_check
        %p181 = pneg %p106
      $region26: #{ppm_forward.1} parent=19 // pred_check_branch
        %183 = sbr.rel (%p181) target = $region28
      $region27: #{ppm_forward.1} parent=19 // pred_region
        %s184 = smul.u32 32, %s16
        %p185 = scmp.lt.s32.totalorder %s184, 63
        %s186 = scalar_select %p185, %s184, 63
        %p187 = scmp.lt.s32.totalorder %s17, 0
        %s188 = scalar_select %p187, %s17, 0
        %s189 = sadd.s32 %s188, %s186
        %s190 = smul.addr %s189, 8
        %s191 = scalar_lea.vmem %s2, %s190
        %s192 = smul.u32 32, %s16
      $region28: #{ppm_forward.1} parent=19 // pred_fallthru
        _
    $region20: #{ppm_forward.1} parent=5 // pred_fallthru
      _
    %p193 = scmp.le.s32.totalorder 1, %s9
    %p194 = scmp.lt.s32.totalorder %s9, 3
    %p195 = pnand %p193, %p194
    %p196 = pneg %p195
    // Predicated region
    $region29: #{ppm_forward.1} parent=5 // pred_check
      _
    $region30: #{ppm_forward.1} parent=5 // pred_check_branch
      %198 = sbr.rel (%p195) target = $region32
    $region31: #{ppm_forward.1} parent=5 // pred_region
      %s199 = ssub.s32 %s9, 1
      %s200 = smul.u32 32, %s19
      %p201 = scmp.lt.s32.totalorder %s200, 63
      %s202 = scalar_select %p201, %s200, 63
      %p203 = scmp.lt.s32.totalorder %s21, 0
      %s204 = scalar_select %p203, %s21, 0
      %s205 = sadd.s32 %s204, %s202
      %s206 = smul.addr %s205, 4
      %s207 = scalar_lea.vmem %s0, %s206
      %p208 = pneg %p56
      %p209 = pneg %p53
      %p210 = scmp.lt.s32.totalorder %s21, 0
      %s211 = scalar_select %p210, %s21, 0
      %p212 = scmp.lt.s32.totalorder %s20, 0
      %s213 = scalar_select %p212, %s20, 0
      %s214 = sadd.s32 %s213, %s211
      %s215 = smul.addr %s214, 4
      %s216 = scalar_lea.vmem %s1, %s215
      %p217 = pneg %p84
      %p218 = pneg %p81
      %s219 = smul.u32 32, %s19
      %p220 = scmp.lt.s32.totalorder %s219, 63
      %s221 = scalar_select %p220, %s219, 63
      %p222 = scmp.lt.s32.totalorder %s20, 0
      %s223 = scalar_select %p222, %s20, 0
      %s224 = sadd.s32 %s223, %s221
      %s225 = smul.addr %s224, 8
      %s226 = scalar_lea.vmem %s2, %s225
      %p227 = pneg %p112
      %p228 = pneg %p109
      %p229 = pneg %p140
      %p230 = pneg %p137
      %s231 = smul.u32 32, %s19
      %p232 = scmp.lt.s32.totalorder %s231, 63
      %s233 = scalar_select %p232, %s231, 63
      %p234 = scmp.lt.s32.totalorder %s20, 0
      %s235 = scalar_select %p234, %s20, 0
      %s236 = sadd.s32 %s235, %s233
      %s237 = smul.addr %s236, 8
      %s238 = scalar_lea.vmem %s3, %s237
      %s239 = smul.u32 32, %s19
      %p240 = scmp.lt.s32.totalorder %s239, 63
      %s241 = scalar_select %p240, %s239, 63
      %p242 = scmp.lt.s32.totalorder %s21, 0
      %s243 = scalar_select %p242, %s21, 0
      %s244 = sadd.s32 %s243, %s241
      %s245 = smul.addr %s244, 4
      %s246 = scalar_lea.vmem %s0, %s245
      %s247 = smul.u32 32, %s19
      %p248 = scmp.lt.s32.totalorder %s21, 0
      %s249 = scalar_select %p248, %s21, 0
      %p250 = scmp.lt.s32.totalorder %s20, 0
      %s251 = scalar_select %p250, %s20, 0
      %s252 = sadd.s32 %s251, %s249
      %s253 = smul.addr %s252, 4
      %s254 = scalar_lea.vmem %s1, %s253
      %s255 = smul.u32 32, %s19
      %p256 = scmp.lt.s32.totalorder %s255, 63
      %s257 = scalar_select %p256, %s255, 63
      %p258 = scmp.lt.s32.totalorder %s20, 0
      %s259 = scalar_select %p258, %s20, 0
      %s260 = sadd.s32 %s259, %s257
      %s261 = smul.addr %s260, 8
      %s262 = scalar_lea.vmem %s2, %s261
      %s263 = smul.u32 32, %s19
      %s264 = smul.u32 32, %s19
      %p265 = scmp.lt.s32.totalorder %s264, 63
      %s266 = scalar_select %p265, %s264, 63
      %p267 = scmp.lt.s32.totalorder %s20, 0
      %s268 = scalar_select %p267, %s20, 0
      %s269 = sadd.s32 %s268, %s266
      %s270 = smul.addr %s269, 8
      %s271 = scalar_lea.vmem %s3, %s270
      %s272 = smul.u32 32, %s19
      %p274 = scmp.eq.s32.totalorder %s21, 0
      // Predicated region
      $region33: #{ppm_forward.1} parent=31 // pred_check
        %p275 = pneg %p274
      $region34: #{ppm_forward.1} parent=31 // pred_check_branch
        %277 = sbr.rel (%p275) target = $region36
      $region35: #{ppm_forward.1} parent=31 // pred_region
        %278 = vst [vmem:[#allocation2] sm:$0xff] 0.0
        %279 = vst [vmem:[#allocation2 + $0x8] sm:$0xff] 0.0
        %280 = vst [vmem:[#allocation2 + $0x10] sm:$0xff] 0.0
        %281 = vst [vmem:[#allocation2 + $0x18] sm:$0xff] 0.0
        %282 = vst [vmem:[#allocation2 + $0x20] sm:$0xff] 0.0
        %283 = vst [vmem:[#allocation2 + $0x28] sm:$0xff] 0.0
        %284 = vst [vmem:[#allocation2 + $0x30] sm:$0xff] 0.0
        %285 = vst [vmem:[#allocation2 + $0x38] sm:$0xff] 0.0
        %286 = vst [vmem:[#allocation2 + $0x40] sm:$0xff] 0.0
        %287 = vst [vmem:[#allocation2 + $0x48] sm:$0xff] 0.0
        %288 = vst [vmem:[#allocation2 + $0x50] sm:$0xff] 0.0
        %289 = vst [vmem:[#allocation2 + $0x58] sm:$0xff] 0.0
        %290 = vst [vmem:[#allocation2 + $0x60] sm:$0xff] 0.0
        %291 = vst [vmem:[#allocation2 + $0x68] sm:$0xff] 0.0
        %292 = vst [vmem:[#allocation2 + $0x70] sm:$0xff] 0.0
        %293 = vst [vmem:[#allocation2 + $0x78] sm:$0xff] 0.0
        %294 = vst [vmem:[#allocation2 + $0x80] sm:$0xff] 0.0
        %295 = vst [vmem:[#allocation2 + $0x88] sm:$0xff] 0.0
        %296 = vst [vmem:[#allocation2 + $0x90] sm:$0xff] 0.0
        %297 = vst [vmem:[#allocation2 + $0x98] sm:$0xff] 0.0
        %298 = vst [vmem:[#allocation2 + $0xa0] sm:$0xff] 0.0
        %299 = vst [vmem:[#allocation2 + $0xa8] sm:$0xff] 0.0
        %300 = vst [vmem:[#allocation2 + $0xb0] sm:$0xff] 0.0
        %301 = vst [vmem:[#allocation2 + $0xb8] sm:$0xff] 0.0
        %302 = vst [vmem:[#allocation2 + $0xc0] sm:$0xff] 0.0
        %303 = vst [vmem:[#allocation2 + $0xc8] sm:$0xff] 0.0
        %304 = vst [vmem:[#allocation2 + $0xd0] sm:$0xff] 0.0
        %305 = vst [vmem:[#allocation2 + $0xd8] sm:$0xff] 0.0
        %306 = vst [vmem:[#allocation2 + $0xe0] sm:$0xff] 0.0
        %307 = vst [vmem:[#allocation2 + $0xe8] sm:$0xff] 0.0
        %308 = vst [vmem:[#allocation2 + $0xf0] sm:$0xff] 0.0
        %309 = vst [vmem:[#allocation2 + $0xf8] sm:$0xff] 0.0
      $region36: #{ppm_forward.1} parent=31 // pred_fallthru
        _
      %v310 = vld [vmem:[#allocation2] sm:$0xff]
      %v311 = vld [vmem:[#allocation2 + $0x8] sm:$0xff]
      %v312 = vld [vmem:[#allocation2 + $0x10] sm:$0xff]
      %v313 = vld [vmem:[#allocation2 + $0x18] sm:$0xff]
      %v314 = vld [vmem:[#allocation2 + $0x20] sm:$0xff]
      %v315 = vld [vmem:[#allocation2 + $0x28] sm:$0xff]
      %v316 = vld [vmem:[#allocation2 + $0x30] sm:$0xff]
      %v317 = vld [vmem:[#allocation2 + $0x38] sm:$0xff]
      %v318 = vld [vmem:[#allocation2 + $0x40] sm:$0xff]
      %v319 = vld [vmem:[#allocation2 + $0x48] sm:$0xff]
      %v320 = vld [vmem:[#allocation2 + $0x50] sm:$0xff]
      %v321 = vld [vmem:[#allocation2 + $0x58] sm:$0xff]
      %v322 = vld [vmem:[#allocation2 + $0x60] sm:$0xff]
      %v323 = vld [vmem:[#allocation2 + $0x68] sm:$0xff]
      %v324 = vld [vmem:[#allocation2 + $0x70] sm:$0xff]
      %v325 = vld [vmem:[#allocation2 + $0x78] sm:$0xff]
      %v326 = vld [vmem:[#allocation2 + $0x80] sm:$0xff]
      %v327 = vld [vmem:[#allocation2 + $0x88] sm:$0xff]
      %v328 = vld [vmem:[#allocation2 + $0x90] sm:$0xff]
      %v329 = vld [vmem:[#allocation2 + $0x98] sm:$0xff]
      %v330 = vld [vmem:[#allocation2 + $0xa0] sm:$0xff]
      %v331 = vld [vmem:[#allocation2 + $0xa8] sm:$0xff]
      %v332 = vld [vmem:[#allocation2 + $0xb0] sm:$0xff]
      %v333 = vld [vmem:[#allocation2 + $0xb8] sm:$0xff]
      %v334 = vld [vmem:[#allocation2 + $0xc0] sm:$0xff]
      %v335 = vld [vmem:[#allocation2 + $0xc8] sm:$0xff]
      %v336 = vld [vmem:[#allocation2 + $0xd0] sm:$0xff]
      %v337 = vld [vmem:[#allocation2 + $0xd8] sm:$0xff]
      %v338 = vld [vmem:[#allocation2 + $0xe0] sm:$0xff]
      %v339 = vld [vmem:[#allocation2 + $0xe8] sm:$0xff]
      %v340 = vld [vmem:[#allocation2 + $0xf0] sm:$0xff]
      %v341 = vld [vmem:[#allocation2 + $0xf8] sm:$0xff]
      %v342 = vld [vmem:[%s246] sm:$0xf]
      %v343 = vld [vmem:[%s246 + $0x4] sm:$0xf]
      %v344 = vld [vmem:[%s246 + $0x8] sm:$0xf]
      %v345 = vld [vmem:[%s246 + $0xc] sm:$0xf]
      %v346 = vld [vmem:[%s246 + $0x10] sm:$0xf]
      %v347 = vld [vmem:[%s246 + $0x14] sm:$0xf]
      %v348 = vld [vmem:[%s246 + $0x18] sm:$0xf]
      %v349 = vld [vmem:[%s246 + $0x1c] sm:$0xf]
      %v350 = vld [vmem:[%s246 + $0x20] sm:$0xf]
      %v351 = vld [vmem:[%s246 + $0x24] sm:$0xf]
      %v352 = vld [vmem:[%s246 + $0x28] sm:$0xf]
      %v353 = vld [vmem:[%s246 + $0x2c] sm:$0xf]
      %v354 = vld [vmem:[%s246 + $0x30] sm:$0xf]
      %v355 = vld [vmem:[%s246 + $0x34] sm:$0xf]
      %v356 = vld [vmem:[%s246 + $0x38] sm:$0xf]
      %v357 = vld [vmem:[%s246 + $0x3c] sm:$0xf]
      %v358 = vld [vmem:[%s246 + $0x40] sm:$0xf]
      %v359 = vld [vmem:[%s246 + $0x44] sm:$0xf]
      %v360 = vld [vmem:[%s246 + $0x48] sm:$0xf]
      %v361 = vld [vmem:[%s246 + $0x4c] sm:$0xf]
      %v362 = vld [vmem:[%s246 + $0x50] sm:$0xf]
      %v363 = vld [vmem:[%s246 + $0x54] sm:$0xf]
      %v364 = vld [vmem:[%s246 + $0x58] sm:$0xf]
      %v365 = vld [vmem:[%s246 + $0x5c] sm:$0xf]
      %v366 = vld [vmem:[%s246 + $0x60] sm:$0xf]
      %v367 = vld [vmem:[%s246 + $0x64] sm:$0xf]
      %v368 = vld [vmem:[%s246 + $0x68] sm:$0xf]
      %v369 = vld [vmem:[%s246 + $0x6c] sm:$0xf]
      %v370 = vld [vmem:[%s246 + $0x70] sm:$0xf]
      %v371 = vld [vmem:[%s246 + $0x74] sm:$0xf]
      %v372 = vld [vmem:[%s246 + $0x78] sm:$0xf]
      %v373 = vld [vmem:[%s246 + $0x7c] sm:$0xf]
      %v374 = vld [vmem:[%s254] sm:$0xf]
      %v407 = vunpack.c.l.b16 %v342
      %v408 = vunpack.c.l.b16 %v343
      %v409 = vunpack.c.l.b16 %v344
      %v410 = vunpack.c.l.b16 %v345
      %v411 = vunpack.c.l.b16 %v346
      %v412 = vunpack.c.l.b16 %v347
      %v413 = vunpack.c.l.b16 %v348
      %v414 = vunpack.c.l.b16 %v349
      %v415 = vunpack.c.l.b16 %v350
      %v416 = vunpack.c.l.b16 %v351
      %v417 = vunpack.c.l.b16 %v352
      %v418 = vunpack.c.l.b16 %v353
      %v419 = vunpack.c.l.b16 %v354
      %v420 = vunpack.c.l.b16 %v355
      %v421 = vunpack.c.l.b16 %v356
      %v422 = vunpack.c.l.b16 %v357
      %v423 = vunpack.c.l.b16 %v358
      %v424 = vunpack.c.l.b16 %v359
      %v425 = vunpack.c.l.b16 %v360
      %v426 = vunpack.c.l.b16 %v361
      %v427 = vunpack.c.l.b16 %v362
      %v428 = vunpack.c.l.b16 %v363
      %v429 = vunpack.c.l.b16 %v364
      %v430 = vunpack.c.l.b16 %v365
      %v431 = vunpack.c.l.b16 %v366
      %v432 = vunpack.c.l.b16 %v367
      %v433 = vunpack.c.l.b16 %v368
      %v434 = vunpack.c.l.b16 %v369
      %v435 = vunpack.c.l.b16 %v370
      %v436 = vunpack.c.l.b16 %v371
      %v437 = vunpack.c.l.b16 %v372
      %v438 = vunpack.c.l.b16 %v373
      %v439 = vpack.c.b16 %v408, %v407
      %v440 = vpack.c.b16 %v410, %v409
      %v441 = vpack.c.b16 %v412, %v411
      %v442 = vpack.c.b16 %v414, %v413
      %v443 = vpack.c.b16 %v416, %v415
      %v444 = vpack.c.b16 %v418, %v417
      %v445 = vpack.c.b16 %v420, %v419
      %v446 = vpack.c.b16 %v422, %v421
      %v447 = vpack.c.b16 %v424, %v423
      %v448 = vpack.c.b16 %v426, %v425
      %v449 = vpack.c.b16 %v428, %v427
      %v450 = vpack.c.b16 %v430, %v429
      %v451 = vpack.c.b16 %v432, %v431
      %v452 = vpack.c.b16 %v434, %v433
      %v453 = vpack.c.b16 %v436, %v435
      %v454 = vpack.c.b16 %v438, %v437
      %vm455 = vcmask 64512
      %v457 = vsel %vm455, %v439, 0
      %v460 = vsel %vm455, %v440, 0
      %v463 = vsel %vm455, %v441, 0
      %v466 = vsel %vm455, %v442, 0
      %v469 = vsel %vm455, %v443, 0
      %v472 = vsel %vm455, %v444, 0
      %v475 = vsel %vm455, %v445, 0
      %v478 = vsel %vm455, %v446, 0
      %v481 = vsel %vm455, %v447, 0
      %v484 = vsel %vm455, %v448, 0
      %v487 = vsel %vm455, %v449, 0
      %v490 = vsel %vm455, %v450, 0
      %v493 = vsel %vm455, %v451, 0
      %v496 = vsel %vm455, %v452, 0
      %v499 = vsel %vm455, %v453, 0
      %v502 = vsel %vm455, %v454, 0
      %vm504 = vcmask 1043456
      %v506 = vsel %vm504, %v374, 0
      %508 = vmatprep.subr.bf16.mxu0 0
      %509 = vmatpush1.bf16.msra.mxu0 %v506
      %510 = vmatprep.subr.bf16.mxu0 0
      %511 = vmatpush1.bf16.msra.mxu0 0
      %512 = vmatprep.subr.bf16.mxu0 0
      %513 = vmatpush1.bf16.msra.mxu0 0
      %514 = vmatprep.subr.bf16.mxu0 0
      %515 = vmatpush1.bf16.msra.mxu0 0
      %516 = vmatprep.subr.bf16.mxu0 0
      %517 = vmatpush1.bf16.msra.mxu0 0
      %518 = vmatprep.subr.bf16.mxu0 0
      %519 = vmatpush1.bf16.msra.mxu0 0
      %520 = vmatprep.subr.bf16.mxu0 0
      %521 = vmatpush1.bf16.msra.mxu0 0
      %522 = vmatprep.subr.bf16.mxu0 0
      %523 = vmatpush1.bf16.msra.mxu0 0
      %524 = vmatprep.subr.bf16.mxu0 0
      %525 = vmatpush1.bf16.msra.mxu0 0
      %526 = vmatprep.subr.bf16.mxu0 0
      %527 = vmatpush1.bf16.msra.mxu0 0
      %528 = vmatprep.subr.bf16.mxu0 0
      %529 = vmatpush1.bf16.msra.mxu0 0
      %530 = vmatprep.subr.bf16.mxu0 0
      %531 = vmatpush1.bf16.msra.mxu0 0
      %532 = vmatprep.subr.bf16.mxu0 0
      %533 = vmatpush1.bf16.msra.mxu0 0
      %534 = vmatprep.subr.bf16.mxu0 0
      %535 = vmatpush1.bf16.msra.mxu0 0
      %536 = vmatprep.subr.bf16.mxu0 0
      %537 = vmatpush1.bf16.msra.mxu0 0
      %538 = vmatprep.subr.bf16.mxu0 0
      %539 = vmatpush1.bf16.msra.mxu0 0
      %540 = vmatprep.mubr.bf16.mxu0 0
      %541 = vmatmul.mubr.bf16.gmra.mrb[0].mxu0 %v457
      %v542 = vpop.f32.mrb[0].mxu0
      %v543 = vadd.f32 0.0, %v542
      %v544 = vpop.f32.mrb[0].mxu0
      %v545 = vpop.f32.mrb[0].mxu0
      %v546 = vadd.f32 0.0, %v545
      %v547 = vpop.f32.mrb[0].mxu0
      %548 = vmatprep.mubr.bf16.mxu0 0
      %549 = vmatmul.mubr.bf16.gmra.mrb[0].mxu0 %v460
      %v550 = vpop.f32.mrb[0].mxu0
      %v551 = vadd.f32 0.0, %v550
      %v552 = vpop.f32.mrb[0].mxu0
      %v553 = vpop.f32.mrb[0].mxu0
      %v554 = vadd.f32 0.0, %v553
      %v555 = vpop.f32.mrb[0].mxu0
      %556 = vmatprep.mubr.bf16.mxu0 0
      %557 = vmatmul.mubr.bf16.gmra.mrb[0].mxu0 %v463
      %v558 = vpop.f32.mrb[0].mxu0
      %v559 = vadd.f32 0.0, %v558
      %v560 = vpop.f32.mrb[0].mxu0
      %v561 = vpop.f32.mrb[0].mxu0
      %v562 = vadd.f32 0.0, %v561
      %v563 = vpop.f32.mrb[0].mxu0
      %564 = vmatprep.mubr.bf16.mxu0 0
      %565 = vmatmul.mubr.bf16.gmra.mrb[0].mxu0 %v466
      %v566 = vpop.f32.mrb[0].mxu0
      %v567 = vadd.f32 0.0, %v566
      %v568 = vpop.f32.mrb[0].mxu0
      %v569 = vpop.f32.mrb[0].mxu0
      %v570 = vadd.f32 0.0, %v569
      %v571 = vpop.f32.mrb[0].mxu0
      %572 = vmatprep.mubr.bf16.mxu0 0
      %573 = vmatmul.mubr.bf16.gmra.mrb[0].mxu0 %v469
      %v574 = vpop.f32.mrb[0].mxu0
      %v575 = vadd.f32 0.0, %v574
      %v576 = vpop.f32.mrb[0].mxu0
      %v577 = vpop.f32.mrb[0].mxu0
      %v578 = vadd.f32 0.0, %v577
      %v579 = vpop.f32.mrb[0].mxu0
      %580 = vmatprep.mubr.bf16.mxu0 0
      %581 = vmatmul.mubr.bf16.gmra.mrb[0].mxu0 %v472
      %v582 = vpop.f32.mrb[0].mxu0
      %v583 = vadd.f32 0.0, %v582
      %v584 = vpop.f32.mrb[0].mxu0
      %v585 = vpop.f32.mrb[0].mxu0
      %v586 = vadd.f32 0.0, %v585
      %v587 = vpop.f32.mrb[0].mxu0
      %588 = vmatprep.mubr.bf16.mxu0 0
      %589 = vmatmul.mubr.bf16.gmra.mrb[0].mxu0 %v475
      %v590 = vpop.f32.mrb[0].mxu0
      %v591 = vadd.f32 0.0, %v590
      %v592 = vpop.f32.mrb[0].mxu0
      %v593 = vpop.f32.mrb[0].mxu0
      %v594 = vadd.f32 0.0, %v593
      %v595 = vpop.f32.mrb[0].mxu0
      %596 = vmatprep.mubr.bf16.mxu0 0
      %597 = vmatmul.mubr.bf16.gmra.mrb[0].mxu0 %v478
      %v598 = vpop.f32.mrb[0].mxu0
      %v599 = vadd.f32 0.0, %v598
      %v600 = vpop.f32.mrb[0].mxu0
      %v601 = vpop.f32.mrb[0].mxu0
      %v602 = vadd.f32 0.0, %v601
      %v603 = vpop.f32.mrb[0].mxu0
      %604 = vmatprep.mubr.bf16.mxu0 0
      %605 = vmatmul.mubr.bf16.gmra.mrb[0].mxu0 %v481
      %v606 = vpop.f32.mrb[0].mxu0
      %v607 = vadd.f32 0.0, %v606
      %v608 = vpop.f32.mrb[0].mxu0
      %v609 = vpop.f32.mrb[0].mxu0
      %v610 = vadd.f32 0.0, %v609
      %v611 = vpop.f32.mrb[0].mxu0
      %612 = vmatprep.mubr.bf16.mxu0 0
      %613 = vmatmul.mubr.bf16.gmra.mrb[0].mxu0 %v484
      %v614 = vpop.f32.mrb[0].mxu0
      %v615 = vadd.f32 0.0, %v614
      %v616 = vpop.f32.mrb[0].mxu0
      %v617 = vpop.f32.mrb[0].mxu0
      %v618 = vadd.f32 0.0, %v617
      %v619 = vpop.f32.mrb[0].mxu0
      %620 = vmatprep.mubr.bf16.mxu0 0
      %621 = vmatmul.mubr.bf16.gmra.mrb[0].mxu0 %v487
      %v622 = vpop.f32.mrb[0].mxu0
      %v623 = vadd.f32 0.0, %v622
      %v624 = vpop.f32.mrb[0].mxu0
      %v625 = vpop.f32.mrb[0].mxu0
      %v626 = vadd.f32 0.0, %v625
      %v627 = vpop.f32.mrb[0].mxu0
      %628 = vmatprep.mubr.bf16.mxu0 0
      %629 = vmatmul.mubr.bf16.gmra.mrb[0].mxu0 %v490
      %v630 = vpop.f32.mrb[0].mxu0
      %v631 = vadd.f32 0.0, %v630
      %v632 = vpop.f32.mrb[0].mxu0
      %v633 = vpop.f32.mrb[0].mxu0
      %v634 = vadd.f32 0.0, %v633
      %v635 = vpop.f32.mrb[0].mxu0
      %636 = vmatprep.mubr.bf16.mxu0 0
      %637 = vmatmul.mubr.bf16.gmra.mrb[0].mxu0 %v493
      %v638 = vpop.f32.mrb[0].mxu0
      %v639 = vadd.f32 0.0, %v638
      %v640 = vpop.f32.mrb[0].mxu0
      %v641 = vpop.f32.mrb[0].mxu0
      %v642 = vadd.f32 0.0, %v641
      %v643 = vpop.f32.mrb[0].mxu0
      %644 = vmatprep.mubr.bf16.mxu0 0
      %645 = vmatmul.mubr.bf16.gmra.mrb[0].mxu0 %v496
      %v646 = vpop.f32.mrb[0].mxu0
      %v647 = vadd.f32 0.0, %v646
      %v648 = vpop.f32.mrb[0].mxu0
      %v649 = vpop.f32.mrb[0].mxu0
      %v650 = vadd.f32 0.0, %v649
      %v651 = vpop.f32.mrb[0].mxu0
      %652 = vmatprep.mubr.bf16.mxu0 0
      %653 = vmatmul.mubr.bf16.gmra.mrb[0].mxu0 %v499
      %v654 = vpop.f32.mrb[0].mxu0
      %v655 = vadd.f32 0.0, %v654
      %v656 = vpop.f32.mrb[0].mxu0
      %v657 = vpop.f32.mrb[0].mxu0
      %v658 = vadd.f32 0.0, %v657
      %v659 = vpop.f32.mrb[0].mxu0
      %660 = vmatprep.mubr.bf16.mxu0 0
      %661 = vmatmul.mubr.bf16.gmra.mrb[0].mxu0 %v502
      %v662 = vpop.f32.mrb[0].mxu0
      %v663 = vadd.f32 0.0, %v662
      %v664 = vpop.f32.mrb[0].mxu0
      %v665 = vpop.f32.mrb[0].mxu0
      %v666 = vadd.f32 0.0, %v665
      %v667 = vpop.f32.mrb[0].mxu0
      %668 = vdwg.mxu0
      %v669 = vadd.f32 %v310, %v543
      %v670 = vadd.f32 %v311, %v546
      %v671 = vadd.f32 %v312, %v551
      %v672 = vadd.f32 %v313, %v554
      %v673 = vadd.f32 %v314, %v559
      %v674 = vadd.f32 %v315, %v562
      %v675 = vadd.f32 %v316, %v567
      %v676 = vadd.f32 %v317, %v570
      %v677 = vadd.f32 %v318, %v575
      %v678 = vadd.f32 %v319, %v578
      %v679 = vadd.f32 %v320, %v583
      %v680 = vadd.f32 %v321, %v586
      %v681 = vadd.f32 %v322, %v591
      %v682 = vadd.f32 %v323, %v594
      %v683 = vadd.f32 %v324, %v599
      %v684 = vadd.f32 %v325, %v602
      %v685 = vadd.f32 %v326, %v607
      %v686 = vadd.f32 %v327, %v610
      %v687 = vadd.f32 %v328, %v615
      %v688 = vadd.f32 %v329, %v618
      %v689 = vadd.f32 %v330, %v623
      %v690 = vadd.f32 %v331, %v626
      %v691 = vadd.f32 %v332, %v631
      %v692 = vadd.f32 %v333, %v634
      %v693 = vadd.f32 %v334, %v639
      %v694 = vadd.f32 %v335, %v642
      %v695 = vadd.f32 %v336, %v647
      %v696 = vadd.f32 %v337, %v650
      %v697 = vadd.f32 %v338, %v655
      %v698 = vadd.f32 %v339, %v658
      %v699 = vadd.f32 %v340, %v663
      %v700 = vadd.f32 %v341, %v666
      %701 = vst [vmem:[#allocation2] sm:$0xff] %v669
      %702 = vst [vmem:[#allocation2 + $0x8] sm:$0xff] %v670
      %703 = vst [vmem:[#allocation2 + $0x10] sm:$0xff] %v671
      %704 = vst [vmem:[#allocation2 + $0x18] sm:$0xff] %v672
      %705 = vst [vmem:[#allocation2 + $0x20] sm:$0xff] %v673
      %706 = vst [vmem:[#allocation2 + $0x28] sm:$0xff] %v674
      %707 = vst [vmem:[#allocation2 + $0x30] sm:$0xff] %v675
      %708 = vst [vmem:[#allocation2 + $0x38] sm:$0xff] %v676
      %709 = vst [vmem:[#allocation2 + $0x40] sm:$0xff] %v677
      %710 = vst [vmem:[#allocation2 + $0x48] sm:$0xff] %v678
      %711 = vst [vmem:[#allocation2 + $0x50] sm:$0xff] %v679
      %712 = vst [vmem:[#allocation2 + $0x58] sm:$0xff] %v680
      %713 = vst [vmem:[#allocation2 + $0x60] sm:$0xff] %v681
      %714 = vst [vmem:[#allocation2 + $0x68] sm:$0xff] %v682
      %715 = vst [vmem:[#allocation2 + $0x70] sm:$0xff] %v683
      %716 = vst [vmem:[#allocation2 + $0x78] sm:$0xff] %v684
      %717 = vst [vmem:[#allocation2 + $0x80] sm:$0xff] %v685
      %718 = vst [vmem:[#allocation2 + $0x88] sm:$0xff] %v686
      %719 = vst [vmem:[#allocation2 + $0x90] sm:$0xff] %v687
      %720 = vst [vmem:[#allocation2 + $0x98] sm:$0xff] %v688
      %721 = vst [vmem:[#allocation2 + $0xa0] sm:$0xff] %v689
      %722 = vst [vmem:[#allocation2 + $0xa8] sm:$0xff] %v690
      %723 = vst [vmem:[#allocation2 + $0xb0] sm:$0xff] %v691
      %724 = vst [vmem:[#allocation2 + $0xb8] sm:$0xff] %v692
      %725 = vst [vmem:[#allocation2 + $0xc0] sm:$0xff] %v693
      %726 = vst [vmem:[#allocation2 + $0xc8] sm:$0xff] %v694
      %727 = vst [vmem:[#allocation2 + $0xd0] sm:$0xff] %v695
      %728 = vst [vmem:[#allocation2 + $0xd8] sm:$0xff] %v696
      %729 = vst [vmem:[#allocation2 + $0xe0] sm:$0xff] %v697
      %730 = vst [vmem:[#allocation2 + $0xe8] sm:$0xff] %v698
      %731 = vst [vmem:[#allocation2 + $0xf0] sm:$0xff] %v699
      %732 = vst [vmem:[#allocation2 + $0xf8] sm:$0xff] %v700
      // Predicated region
      $region37: #{ppm_forward.1} parent=31 // pred_check
        %p733 = pneg %p274
      $region38: #{ppm_forward.1} parent=31 // pred_check_branch
        %735 = sbr.rel (%p733) target = $region40
      $region39: #{ppm_forward.1} parent=31 // pred_region
        %v736 = vld [vmem:[#allocation2] sm:$0xff]
        %v737 = vld [vmem:[#allocation2 + $0x8] sm:$0xff]
        %v738 = vld [vmem:[#allocation2 + $0x10] sm:$0xff]
        %v739 = vld [vmem:[#allocation2 + $0x18] sm:$0xff]
        %v740 = vld [vmem:[#allocation2 + $0x20] sm:$0xff]
        %v741 = vld [vmem:[#allocation2 + $0x28] sm:$0xff]
        %v742 = vld [vmem:[#allocation2 + $0x30] sm:$0xff]
        %v743 = vld [vmem:[#allocation2 + $0x38] sm:$0xff]
        %v744 = vld [vmem:[#allocation2 + $0x40] sm:$0xff]
        %v745 = vld [vmem:[#allocation2 + $0x48] sm:$0xff]
        %v746 = vld [vmem:[#allocation2 + $0x50] sm:$0xff]
        %v747 = vld [vmem:[#allocation2 + $0x58] sm:$0xff]
        %v748 = vld [vmem:[#allocation2 + $0x60] sm:$0xff]
        %v749 = vld [vmem:[#allocation2 + $0x68] sm:$0xff]
        %v750 = vld [vmem:[#allocation2 + $0x70] sm:$0xff]
        %v751 = vld [vmem:[#allocation2 + $0x78] sm:$0xff]
        %v752 = vld [vmem:[#allocation2 + $0x80] sm:$0xff]
        %v753 = vld [vmem:[#allocation2 + $0x88] sm:$0xff]
        %v754 = vld [vmem:[#allocation2 + $0x90] sm:$0xff]
        %v755 = vld [vmem:[#allocation2 + $0x98] sm:$0xff]
        %v756 = vld [vmem:[#allocation2 + $0xa0] sm:$0xff]
        %v757 = vld [vmem:[#allocation2 + $0xa8] sm:$0xff]
        %v758 = vld [vmem:[#allocation2 + $0xb0] sm:$0xff]
        %v759 = vld [vmem:[#allocation2 + $0xb8] sm:$0xff]
        %v760 = vld [vmem:[#allocation2 + $0xc0] sm:$0xff]
        %v761 = vld [vmem:[#allocation2 + $0xc8] sm:$0xff]
        %v762 = vld [vmem:[#allocation2 + $0xd0] sm:$0xff]
        %v763 = vld [vmem:[#allocation2 + $0xd8] sm:$0xff]
        %v764 = vld [vmem:[#allocation2 + $0xe0] sm:$0xff]
        %v765 = vld [vmem:[#allocation2 + $0xe8] sm:$0xff]
        %v766 = vld [vmem:[#allocation2 + $0xf0] sm:$0xff]
        %v767 = vld [vmem:[#allocation2 + $0xf8] sm:$0xff]
        %v768 = vld [vmem:[%s262] sm:$0xff]
        %v769 = vld [vmem:[%s262 + $0x8] sm:$0xff]
        %v770 = vld [vmem:[%s262 + $0x10] sm:$0xff]
        %v771 = vld [vmem:[%s262 + $0x18] sm:$0xff]
        %v772 = vld [vmem:[%s262 + $0x20] sm:$0xff]
        %v773 = vld [vmem:[%s262 + $0x28] sm:$0xff]
        %v774 = vld [vmem:[%s262 + $0x30] sm:$0xff]
        %v775 = vld [vmem:[%s262 + $0x38] sm:$0xff]
        %v776 = vld [vmem:[%s262 + $0x40] sm:$0xff]
        %v777 = vld [vmem:[%s262 + $0x48] sm:$0xff]
        %v778 = vld [vmem:[%s262 + $0x50] sm:$0xff]
        %v779 = vld [vmem:[%s262 + $0x58] sm:$0xff]
        %v780 = vld [vmem:[%s262 + $0x60] sm:$0xff]
        %v781 = vld [vmem:[%s262 + $0x68] sm:$0xff]
        %v782 = vld [vmem:[%s262 + $0x70] sm:$0xff]
        %v783 = vld [vmem:[%s262 + $0x78] sm:$0xff]
        %v784 = vld [vmem:[%s262 + $0x80] sm:$0xff]
        %v785 = vld [vmem:[%s262 + $0x88] sm:$0xff]
        %v786 = vld [vmem:[%s262 + $0x90] sm:$0xff]
        %v787 = vld [vmem:[%s262 + $0x98] sm:$0xff]
        %v788 = vld [vmem:[%s262 + $0xa0] sm:$0xff]
        %v789 = vld [vmem:[%s262 + $0xa8] sm:$0xff]
        %v790 = vld [vmem:[%s262 + $0xb0] sm:$0xff]
        %v791 = vld [vmem:[%s262 + $0xb8] sm:$0xff]
        %v792 = vld [vmem:[%s262 + $0xc0] sm:$0xff]
        %v793 = vld [vmem:[%s262 + $0xc8] sm:$0xff]
        %v794 = vld [vmem:[%s262 + $0xd0] sm:$0xff]
        %v795 = vld [vmem:[%s262 + $0xd8] sm:$0xff]
        %v796 = vld [vmem:[%s262 + $0xe0] sm:$0xff]
        %v797 = vld [vmem:[%s262 + $0xe8] sm:$0xff]
        %v798 = vld [vmem:[%s262 + $0xf0] sm:$0xff]
        %v799 = vld [vmem:[%s262 + $0xf8] sm:$0xff]
        %v800 = vadd.f32 %v736, %v768
        %v801 = vadd.f32 %v737, %v769
        %v802 = vadd.f32 %v738, %v770
        %v803 = vadd.f32 %v739, %v771
        %v804 = vadd.f32 %v740, %v772
        %v805 = vadd.f32 %v741, %v773
        %v806 = vadd.f32 %v742, %v774
        %v807 = vadd.f32 %v743, %v775
        %v808 = vadd.f32 %v744, %v776
        %v809 = vadd.f32 %v745, %v777
        %v810 = vadd.f32 %v746, %v778
        %v811 = vadd.f32 %v747, %v779
        %v812 = vadd.f32 %v748, %v780
        %v813 = vadd.f32 %v749, %v781
        %v814 = vadd.f32 %v750, %v782
        %v815 = vadd.f32 %v751, %v783
        %v816 = vadd.f32 %v752, %v784
        %v817 = vadd.f32 %v753, %v785
        %v818 = vadd.f32 %v754, %v786
        %v819 = vadd.f32 %v755, %v787
        %v820 = vadd.f32 %v756, %v788
        %v821 = vadd.f32 %v757, %v789
        %v822 = vadd.f32 %v758, %v790
        %v823 = vadd.f32 %v759, %v791
        %v824 = vadd.f32 %v760, %v792
        %v825 = vadd.f32 %v761, %v793
        %v826 = vadd.f32 %v762, %v794
        %v827 = vadd.f32 %v763, %v795
        %v828 = vadd.f32 %v764, %v796
        %v829 = vadd.f32 %v765, %v797
        %v830 = vadd.f32 %v766, %v798
        %v831 = vadd.f32 %v767, %v799
        %v832 = vmax.f32 %v800, 0.0
        %v833 = vmax.f32 %v801, 0.0
        %v834 = vmax.f32 %v802, 0.0
        %v835 = vmax.f32 %v803, 0.0
        %v836 = vmax.f32 %v804, 0.0
        %v837 = vmax.f32 %v805, 0.0
        %v838 = vmax.f32 %v806, 0.0
        %v839 = vmax.f32 %v807, 0.0
        %v840 = vmax.f32 %v808, 0.0
        %v841 = vmax.f32 %v809, 0.0
        %v842 = vmax.f32 %v810, 0.0
        %v843 = vmax.f32 %v811, 0.0
        %v844 = vmax.f32 %v812, 0.0
        %v845 = vmax.f32 %v813, 0.0
        %v846 = vmax.f32 %v814, 0.0
        %v847 = vmax.f32 %v815, 0.0
        %v848 = vmax.f32 %v816, 0.0
        %v849 = vmax.f32 %v817, 0.0
        %v850 = vmax.f32 %v818, 0.0
        %v851 = vmax.f32 %v819, 0.0
        %v852 = vmax.f32 %v820, 0.0
        %v853 = vmax.f32 %v821, 0.0
        %v854 = vmax.f32 %v822, 0.0
        %v855 = vmax.f32 %v823, 0.0
        %v856 = vmax.f32 %v824, 0.0
        %v857 = vmax.f32 %v825, 0.0
        %v858 = vmax.f32 %v826, 0.0
        %v859 = vmax.f32 %v827, 0.0
        %v860 = vmax.f32 %v828, 0.0
        %v861 = vmax.f32 %v829, 0.0
        %v862 = vmax.f32 %v830, 0.0
        %v863 = vmax.f32 %v831, 0.0
        %864 = vst [vmem:[%s271] sm:$0xff] %v832
        %865 = vst [vmem:[%s271 + $0x8] sm:$0xff] %v833
        %866 = vst [vmem:[%s271 + $0x10] sm:$0xff] %v834
        %867 = vst [vmem:[%s271 + $0x18] sm:$0xff] %v835
        %868 = vst [vmem:[%s271 + $0x20] sm:$0xff] %v836
        %869 = vst [vmem:[%s271 + $0x28] sm:$0xff] %v837
        %870 = vst [vmem:[%s271 + $0x30] sm:$0xff] %v838
        %871 = vst [vmem:[%s271 + $0x38] sm:$0xff] %v839
        %872 = vst [vmem:[%s271 + $0x40] sm:$0xff] %v840
        %873 = vst [vmem:[%s271 + $0x48] sm:$0xff] %v841
        %874 = vst [vmem:[%s271 + $0x50] sm:$0xff] %v842
        %875 = vst [vmem:[%s271 + $0x58] sm:$0xff] %v843
        %876 = vst [vmem:[%s271 + $0x60] sm:$0xff] %v844
        %877 = vst [vmem:[%s271 + $0x68] sm:$0xff] %v845
        %878 = vst [vmem:[%s271 + $0x70] sm:$0xff] %v846
        %879 = vst [vmem:[%s271 + $0x78] sm:$0xff] %v847
        %880 = vst [vmem:[%s271 + $0x80] sm:$0xff] %v848
        %881 = vst [vmem:[%s271 + $0x88] sm:$0xff] %v849
        %882 = vst [vmem:[%s271 + $0x90] sm:$0xff] %v850
        %883 = vst [vmem:[%s271 + $0x98] sm:$0xff] %v851
        %884 = vst [vmem:[%s271 + $0xa0] sm:$0xff] %v852
        %885 = vst [vmem:[%s271 + $0xa8] sm:$0xff] %v853
        %886 = vst [vmem:[%s271 + $0xb0] sm:$0xff] %v854
        %887 = vst [vmem:[%s271 + $0xb8] sm:$0xff] %v855
        %888 = vst [vmem:[%s271 + $0xc0] sm:$0xff] %v856
        %889 = vst [vmem:[%s271 + $0xc8] sm:$0xff] %v857
        %890 = vst [vmem:[%s271 + $0xd0] sm:$0xff] %v858
        %891 = vst [vmem:[%s271 + $0xd8] sm:$0xff] %v859
        %892 = vst [vmem:[%s271 + $0xe0] sm:$0xff] %v860
        %893 = vst [vmem:[%s271 + $0xe8] sm:$0xff] %v861
        %894 = vst [vmem:[%s271 + $0xf0] sm:$0xff] %v862
        %895 = vst [vmem:[%s271 + $0xf8] sm:$0xff] %v863
      $region40: #{ppm_forward.1} parent=31 // pred_fallthru
        _
      %s896 = smul.u32 32, %s19
      %p897 = scmp.lt.s32.totalorder %s896, 63
      %s898 = scalar_select %p897, %s896, 63
      %p899 = scmp.lt.s32.totalorder %s20, 0
      %s900 = scalar_select %p899, %s20, 0
      %s901 = sadd.s32 %s900, %s898
      %s902 = smul.addr %s901, 8
      %s903 = scalar_lea.vmem %s3, %s902
      // Predicated region
      $region41: #{ppm_forward.1} parent=31 // pred_check
        %p904 = pneg %p137
      $region42: #{ppm_forward.1} parent=31 // pred_check_branch
        %906 = sbr.rel (%p904) target = $region44
      $region43: #{ppm_forward.1} parent=31 // pred_region
        %s907 = smul.u32 32, %s19
      $region44: #{ppm_forward.1} parent=31 // pred_fallthru
        _
    $region32: #{ppm_forward.1} parent=5 // pred_fallthru
      _
    %p908 = scmp.le.s32.totalorder 2, %s9
    // Predicated region
    $region45: #{ppm_forward.1} parent=5 // pred_check
      %p909 = pneg %p908
    $region46: #{ppm_forward.1} parent=5 // pred_check_branch
      %911 = sbr.rel (%p909) target = $region48
    $region47: #{ppm_forward.1} parent=5 // pred_region
      %s912 = ssub.s32 %s9, 2
      // Predicated region
      $region49: #{ppm_forward.1} parent=47 // pred_check
        %p913 = pneg %p143
      $region50: #{ppm_forward.1} parent=47 // pred_check_branch
        %915 = sbr.rel (%p913) target = $region52
      $region51: #{ppm_forward.1} parent=47 // pred_region
        %s916 = smul.u32 32, %s22
        %p917 = scmp.lt.s32.totalorder %s916, 63
        %s918 = scalar_select %p917, %s916, 63
        %p919 = scmp.lt.s32.totalorder %s23, 0
        %s920 = scalar_select %p919, %s23, 0
        %s921 = sadd.s32 %s920, %s918
        %s922 = smul.addr %s921, 8
        %s923 = scalar_lea.vmem %s3, %s922
      $region52: #{ppm_forward.1} parent=47 // pred_fallthru
        _
    $region48: #{ppm_forward.1} parent=5 // pred_fallthru
      _
  $region6: #{ppm_forward.1} parent=0 // loop_footer
    %s13 = sadd.s32 1, %s9
  $region7: #{ppm_forward.1} parent=0 // loop_footer_branch
    %8 = sbr.rel target = $region3
  $region8: #{ppm_forward.1} parent=0 // loop_exit
    _

</llo_original>
